<compile_context>
chip_gen: v7x
topology: tpu7x:2x2x1
jax: 0.10.0
libtpu: 0.0.40
codegen_flags: <defaults>
</compile_context>

<pallas_src>
import functools

import jax
import jax.numpy as jnp
from jax import lax
from jax.experimental import pallas as pl
from jax.experimental.pallas import tpu as pltpu


# --------------------------- fused bidirectional GRU kernel ---------------------------
def _bigru_kernel(TT, H,
                  len_ref, gi_ref, wh_ref, bh_ref,
                  out_ref, hfin_ref,
                  h_scr):
    """One grid step == one (direction, time-tile) pair of a bidirectional GRU.

    grid = (2, num_time_tiles): axis 0 = direction (parallel), axis 1 = time tiles
    (arbitrary; the hidden state is carried across tiles in a VMEM scratch).

    Packed-sequence semantics (pack_padded_sequence / pad_packed_sequence): the
    hidden state is frozen and the per-timestep output zeroed once t >= length[b].
    The input-side projections gi = x @ W_i + b_i arrive precomputed (hoisted GEMM).
    """
    d = pl.program_id(0)          # 0 = forward, 1 = backward
    tb = pl.program_id(1)
    nT = pl.num_programs(1)

    @pl.when(tb == 0)
    def _():
        h_scr[...] = jnp.zeros_like(h_scr)

    wh = wh_ref[...]              # (H, 3H) fused hidden-side weights
    bh = bh_ref[...]              # (1, 3H)
    lengths = len_ref[...]        # (B, 1) int32, resident

    # global time of local row i in this tile (backward walks tiles in reverse)
    tile = tb + d * (nT - 1 - 2 * tb)
    t_base = tile * TT

    def step(j, h):
        # local timestep inside the tile; the backward direction walks it reversed
        i = jnp.where(d == 0, j, TT - 1 - j)
        gi = gi_ref[i]            # (B, 3H)  precomputed input projection
        gh = jnp.dot(h, wh, preferred_element_type=jnp.float32) + bh  # only dot on the chain
        rz = jax.nn.sigmoid(gi[:, 0:2 * H] + gh[:, 0:2 * H])          # fused r,z sigmoid
        r = rz[:, 0:H]
        z = rz[:, H:2 * H]
        n = jnp.tanh(gi[:, 2 * H:3 * H] + r * gh[:, 2 * H:3 * H])
        h_new = n + z * (h - n)   # == (1-z)*n + z*h with one fewer dependent mul
        valid = (t_base + i) < lengths                     # (B,1) bool mask
        out_ref[i] = jnp.where(valid, h_new, 0.0).astype(out_ref.dtype)
        return jnp.where(valid, h_new, h)                  # freeze state past seq end

    h = lax.fori_loop(0, TT, step, h_scr[...], unroll=min(TT, 8))
    h_scr[...] = h

    # Final hidden: resident output block, written only on the last tile.
    @pl.when(tb == nT - 1)
    def _():
        hfin_ref[...] = h.astype(hfin_ref.dtype)


def bigru(embedded, lengths, wi2, wh2, bi2, bh2, *, time_tile=None):
    """Bidirectional GRU over (T, B, E) with variable lengths.

    Returns (outputs, h_final): outputs (2, T, B, H) stacked (fwd, bwd),
    h_final (2, B, H).
    """
    T, B, E = embedded.shape
    H = wh2.shape[1]
    TT = int(time_tile) if time_tile else min(T, 64)
    nT = pl.cdiv(T, TT)
    T_pad = nT * TT
    B_pad = ((B + 7) // 8) * 8            # pad batch to full sublanes

    if T_pad != T or B_pad != B:
        # padded timesteps / batch rows are fully masked out (length 0), so zeros are safe
        embedded = jnp.pad(embedded, ((0, T_pad - T), (0, B_pad - B), (0, 0)))
    lengths_p = jnp.pad(lengths.astype(jnp.int32), (0, B_pad - B))[:, None]   # (B_pad, 1)

    # ---- hoisted input projections: one dense GEMM for both directions (XLA/MXU) ----
    # (T_pad*B_pad, E) @ (E, 2*3H) in effect; no recurrence, so it hits the matmul
    # roofline and the recurrent kernel below only carries gi tiles + W_h.
    gi = (jnp.einsum('tbe,deg->dtbg', embedded, wi2,
                     preferred_element_type=jnp.float32)
          + bi2[:, None, :, :])           # (2, T_pad, B_pad, 3H)

    def t_idx(d, tb):
        # forward direction walks tiles 0..nT-1, backward walks nT-1..0
        return tb + d * (nT - 1 - 2 * tb)

    kernel = functools.partial(_bigru_kernel, TT, H)

    grid_spec = pltpu.PrefetchScalarGridSpec(
        num_scalar_prefetch=0,
        grid=(2, nT),
        in_specs=[
            pl.BlockSpec((B_pad, 1), lambda d, tb: (0, 0)),                    # lengths (resident)
            pl.BlockSpec((None, TT, B_pad, 3 * H),
                         lambda d, tb: (d, t_idx(d, tb), 0, 0)),               # gi tile
            pl.BlockSpec((None, H, 3 * H), lambda d, tb: (d, 0, 0)),           # W_h fused
            pl.BlockSpec((None, 1, 3 * H), lambda d, tb: (d, 0, 0)),           # b_h fused
        ],
        out_specs=[
            pl.BlockSpec((None, TT, B_pad, H), lambda d, tb: (d, t_idx(d, tb), 0, 0)),
            pl.BlockSpec((None, B_pad, H), lambda d, tb: (d, 0, 0)),           # final hidden
        ],
        scratch_shapes=[
            pltpu.VMEM((B_pad, H), jnp.float32),      # carried hidden state
        ],
    )

    outs, h_fin = pl.pallas_call(
        kernel,
        out_shape=(
            jax.ShapeDtypeStruct((2, T_pad, B_pad, H), jnp.float32),
            jax.ShapeDtypeStruct((2, B_pad, H), jnp.float32),
        ),
        grid_spec=grid_spec,
        compiler_params=pltpu.CompilerParams(
            dimension_semantics=("parallel", "arbitrary")),
    )(lengths_p, gi, wh2, bh2)
    return outs[:, :T, :B], h_fin[:, :B]


# ------------------------------------- Encoder -------------------------------------
class EncoderPallas:
    def __init__(self, input_dim, emb_dim, enc_hid_dim, dec_hid_dim, dropout, key,
                 time_tile=None):
        self.enc_hid_dim = enc_hid_dim
        self.time_tile = time_tile
        H = enc_hid_dim
        ks = jax.random.split(key, 6)
        k = 1.0 / jnp.sqrt(H)

        def u(kk, shape, scale):
            return jax.random.uniform(kk, shape, jnp.float32, -scale, scale)

        # nn.Embedding default init ~ N(0, 1)
        self.embedding = jax.random.normal(ks[0], (input_dim, emb_dim), jnp.float32)

        # Fused GRU params, stacked over direction (0=fwd, 1=bwd), PyTorch gate
        # order (r, z, n) fused along the last (lane) dimension -> 3H.
        self.wi = u(ks[1], (2, emb_dim, 3 * H), k)    # (dir, E, 3H)
        self.wh = u(ks[2], (2, H, 3 * H), k)          # (dir, H, 3H)
        self.bi = u(ks[3], (2, 1, 3 * H), k)          # input-side biases
        self.bh = u(ks[4], (2, 1, 3 * H), k)          # hidden-side biases

        kf = 1.0 / jnp.sqrt(2.0 * H)
        self.fc_w = u(ks[5], (2 * H, dec_hid_dim), kf)
        self.fc_b = jnp.zeros((dec_hid_dim,), jnp.float32)

    def __call__(self, src, src_len):
        # src: (T, B) int32, src_len: (B,) int32
        embedded = self.embedding[src]      # (T, B, E) — gather kept as JAX glue
        # dropout: identity (eval-mode semantics)

        outs, h_fin = bigru(embedded, src_len, self.wi, self.wh, self.bi, self.bh,
                            time_tile=self.time_tile)
        outputs = jnp.concatenate([outs[0], outs[1]], axis=-1)      # (T, B, 2H)

        # fc + tanh: a (B,2H)x(2H,D) matmul is far below one kernel's worth of
        # work — left to XLA instead of a separate pallas_call.
        h_cat = jnp.concatenate([h_fin[0], h_fin[1]], axis=-1)
        hidden = jnp.tanh(h_cat @ self.fc_w + self.fc_b)            # (B, dec_hid)
        return outputs, hidden


# -------------------------------- pure-JAX reference --------------------------------
def _gru_ref(embedded, lengths, wi, wh, bi, bh, reverse):
    T, B, E = embedded.shape
    H = wh.shape[0]
    h = jnp.zeros((B, H), jnp.float32)
    outs = [None] * T
    ts = range(T - 1, -1, -1) if reverse else range(T)
    for t in ts:
        x = embedded[t]
        gi = x @ wi + bi[0]
        gh = h @ wh + bh[0]
        r = jax.nn.sigmoid(gi[:, :H] + gh[:, :H])
        z = jax.nn.sigmoid(gi[:, H:2 * H] + gh[:, H:2 * H])
        n = jnp.tanh(gi[:, 2 * H:] + r * gh[:, 2 * H:])
        h_new = (1.0 - z) * n + z * h
        valid = (lengths > t)[:, None]
        h = jnp.where(valid, h_new, h)
        outs[t] = jnp.where(valid, h_new, 0.0)
    return jnp.stack(outs, axis=0), h


def encoder_ref(enc, src, src_len):
    embedded = enc.embedding[src]
    out_f, h_f = _gru_ref(embedded, src_len, enc.wi[0], enc.wh[0], enc.bi[0], enc.bh[0],
                          reverse=False)
    out_b, h_b = _gru_ref(embedded, src_len, enc.wi[1], enc.wh[1], enc.bi[1], enc.bh[1],
                          reverse=True)
    outputs = jnp.concatenate([out_f, out_b], axis=-1)
    hidden = jnp.tanh(jnp.concatenate([h_f, h_b], axis=-1) @ enc.fc_w + enc.fc_b)
    return outputs, hidden


# ----------------------------------------- main -----------------------------------------
if __name__ == "__main__":
    INPUT_DIM, EMB_DIM, ENC_HID, DEC_HID = 50, 32, 32, 32
    T, B = 10, 4

    key = jax.random.PRNGKey(0)
    k_param, k_src = jax.random.split(key)

    # time_tile=4 exercises multi-tile pipelining, time padding (T=10 -> T_pad=12),
    # batch padding (B=4 -> 8 sublanes) and the reversed tile walk of the backward
    # direction.
    enc = EncoderPallas(INPUT_DIM, EMB_DIM, ENC_HID, DEC_HID, dropout=0.0,
                        key=k_param, time_tile=4)

    src = jax.random.randint(k_src, (T, B), 0, INPUT_DIM, dtype=jnp.int32)
    src_len = jnp.array([10, 7, 5, 3], dtype=jnp.int32)  # sorted desc, like pack_padded

    outputs, hidden = enc(src, src_len)
    outputs, hidden = jax.block_until_ready((outputs, hidden))

    ref_out, ref_hid = encoder_ref(enc, src, src_len)
    assert outputs.shape == (T, B, 2 * ENC_HID) and hidden.shape == (B, DEC_HID)
    assert jnp.allclose(outputs, ref_out, atol=1e-4, rtol=1e-4), \
        float(jnp.max(jnp.abs(outputs - ref_out)))
    assert jnp.allclose(hidden, ref_hid, atol=1e-4, rtol=1e-4), \
        float(jnp.max(jnp.abs(hidden - ref_hid)))

    print("KERNEL_OK")
</pallas_src>

<mosaic_0001>
module attributes {stable_mosaic.version = 11 : i64} {
  func.func @_bigru_kernel(%arg0: i32, %arg1: i32, %arg2: memref<8x1xi32, #tpu.memory_space<vmem>>, %arg3: memref<1x4x8x96xf32, #tpu.memory_space<vmem>>, %arg4: memref<1x32x96xf32, #tpu.memory_space<vmem>>, %arg5: memref<1x1x96xf32, #tpu.memory_space<vmem>>, %arg6: memref<1x4x8x32xf32, #tpu.memory_space<vmem>>, %arg7: memref<1x8x32xf32, #tpu.memory_space<vmem>>, %arg8: memref<8x32xf32, #tpu.memory_space<vmem>>) attributes {dimension_semantics = [#tpu.dimension_semantics<parallel>, #tpu.dimension_semantics<arbitrary>], iteration_bounds = array<i64: 2, 3>, scalar_prefetch = 0 : i64, scratch_operands = 1 : i64, tpu.core_type = #tpu.core_type<tc>, window_params = [{pipeline_mode = #tpu.pipeline_mode<synchronous>, transform_indices = @transform_0, window_bounds = array<i64: 8, 1>}, {transform_indices = @transform_1, window_bounds = array<i64: 1, 4, 8, 96>}, {transform_indices = @transform_2, window_bounds = array<i64: 1, 32, 96>}, {transform_indices = @transform_3, window_bounds = array<i64: 1, 1, 96>}, {transform_indices = @transform_4, window_bounds = array<i64: 1, 4, 8, 32>}, {transform_indices = @transform_5, window_bounds = array<i64: 1, 8, 32>}]} {
    %c0_i32 = arith.constant 0 : i32
    %0 = arith.cmpi eq, %arg1, %c0_i32 : i32
    %1 = arith.extui %0 : i1 to i32
    %c0_i32_0 = arith.constant 0 : i32
    %2 = arith.cmpi ne, %1, %c0_i32_0 : i32
    scf.if %2 {
      %cst_61 = arith.constant 0.000000e+00 : f32
      %182 = vector.broadcast %cst_61 : f32 to vector<8x32xf32>
      %c0_62 = arith.constant 0 : index
      %c0_63 = arith.constant 0 : index
      %183 = vector.load %arg8[%c0_62, %c0_63] : memref<8x32xf32, #tpu.memory_space<vmem>>, vector<8x32xf32>
      tpu.vector_store %arg8[%c0_62, %c0_63], %182 {strides = array<i32>} : memref<8x32xf32, #tpu.memory_space<vmem>>, vector<8x32xf32>,
    } else {
    }
    %c0 = arith.constant 0 : index
    %c0_1 = arith.constant 0 : index
    %c0_2 = arith.constant 0 : index
    %3 = vector.load %arg4[%c0, %c0_1, %c0_2] : memref<1x32x96xf32, #tpu.memory_space<vmem>>, vector<1x32x96xf32>
    %4 = vector.shape_cast %3 : vector<1x32x96xf32> to vector<32x96xf32>
    %c0_3 = arith.constant 0 : index
    %c0_4 = arith.constant 0 : index
    %c0_5 = arith.constant 0 : index
    %5 = vector.load %arg5[%c0_3, %c0_4, %c0_5] : memref<1x1x96xf32, #tpu.memory_space<vmem>>, vector<1x1x96xf32>
    %6 = vector.shape_cast %5 : vector<1x1x96xf32> to vector<1x96xf32>
    %c0_6 = arith.constant 0 : index
    %c0_7 = arith.constant 0 : index
    %7 = vector.load %arg2[%c0_6, %c0_7] : memref<8x1xi32, #tpu.memory_space<vmem>>, vector<8x1xi32>
    %c2_i32 = arith.constant 2 : i32
    %8 = arith.muli %c2_i32, %arg1 : i32
    %c2_i32_8 = arith.constant 2 : i32
    %9 = arith.subi %c2_i32_8, %8 : i32
    %10 = arith.muli %arg0, %9 : i32
    %11 = arith.addi %arg1, %10 : i32
    %c4_i32 = arith.constant 4 : i32
    %12 = arith.muli %11, %c4_i32 : i32
    %c0_9 = arith.constant 0 : index
    %c0_10 = arith.constant 0 : index
    %13 = vector.load %arg8[%c0_9, %c0_10] : memref<8x32xf32, #tpu.memory_space<vmem>>, vector<8x32xf32>
    %c0_i32_11 = arith.constant 0 : i32
    %c0_i32_12 = arith.constant 0 : i32
    %14 = arith.cmpi eq, %arg0, %c0_i32_12 : i32
    %c3_i32 = arith.constant 3 : i32
    %15 = arith.subi %c3_i32, %c0_i32_11 : i32
    %16 = arith.select %14, %c0_i32_11, %15 : i32
    %c0_13 = arith.constant 0 : index
    %17 = arith.index_cast %16 : i32 to index
    %c0_14 = arith.constant 0 : index
    %c0_15 = arith.constant 0 : index
    %18 = vector.load %arg3[%c0_13, %17, %c0_14, %c0_15] : memref<1x4x8x96xf32, #tpu.memory_space<vmem>>, vector<1x1x8x96xf32>
    %19 = vector.shape_cast %18 : vector<1x1x8x96xf32> to vector<8x96xf32>
    %cst = arith.constant dense<0.000000e+00> : vector<8x96xf32>
    %20 = tpu.matmul %13, %4, %cst {dimension_numbers = #tpu.dot_dimension_numbers<[1], [0], [0], [1], [0, 0, 1, 1], [], []>} : vector<8x32xf32>, vector<32x96xf32>, vector<8x96xf32> -> vector<8x96xf32>
    %21 = vector.broadcast %6 : vector<1x96xf32> to vector<8x96xf32>
    %22 = arith.addf %20, %21 : vector<8x96xf32>
    %23 = vector.extract_strided_slice %19 {offsets = [0, 0], sizes = [8, 64], strides = [1, 1]} : vector<8x96xf32> to vector<8x64xf32>
    %24 = vector.extract_strided_slice %22 {offsets = [0, 0], sizes = [8, 64], strides = [1, 1]} : vector<8x96xf32> to vector<8x64xf32>
    %25 = arith.addf %23, %24 : vector<8x64xf32>
    %26 = arith.negf %25 : vector<8x64xf32>
    %27 = math.exp %26 : vector<8x64xf32>
    %cst_16 = arith.constant 1.000000e+00 : f32
    %28 = vector.broadcast %cst_16 : f32 to vector<8x64xf32>
    %29 = arith.addf %28, %27 : vector<8x64xf32>
    %30 = arith.divf %28, %29 : vector<8x64xf32>
    %31 = vector.extract_strided_slice %30 {offsets = [0, 0], sizes = [8, 32], strides = [1, 1]} : vector<8x64xf32> to vector<8x32xf32>
    %32 = vector.extract_strided_slice %30 {offsets = [0, 32], sizes = [8, 32], strides = [1, 1]} : vector<8x64xf32> to vector<8x32xf32>
    %33 = vector.extract_strided_slice %19 {offsets = [0, 64], sizes = [8, 32], strides = [1, 1]} : vector<8x96xf32> to vector<8x32xf32>
    %34 = vector.extract_strided_slice %22 {offsets = [0, 64], sizes = [8, 32], strides = [1, 1]} : vector<8x96xf32> to vector<8x32xf32>
    %35 = arith.mulf %31, %34 : vector<8x32xf32>
    %36 = arith.addf %33, %35 : vector<8x32xf32>
    %37 = math.tanh %36 : vector<8x32xf32>
    %38 = arith.subf %13, %37 : vector<8x32xf32>
    %39 = arith.mulf %32, %38 : vector<8x32xf32>
    %40 = arith.addf %37, %39 : vector<8x32xf32>
    %41 = arith.addi %12, %16 : i32
    %42 = vector.broadcast %41 : i32 to vector<8x1xi32>
    %43 = arith.cmpi slt, %42, %7 : vector<8x1xi32>
    %cst_17 = arith.constant 0.000000e+00 : f32
    %44 = vector.shape_cast %43 : vector<8x1xi1> to vector<8x1xi1>
    %45 = vector.broadcast %44 : vector<8x1xi1> to vector<8x32xi1>
    %46 = vector.broadcast %cst_17 : f32 to vector<8x32xf32>
    %47 = arith.select %45, %40, %46 : vector<8x32xi1>, vector<8x32xf32>
    %c0_18 = arith.constant 0 : index
    %48 = arith.index_cast %16 : i32 to index
    %c0_19 = arith.constant 0 : index
    %c0_20 = arith.constant 0 : index
    %49 = vector.load %arg6[%c0_18, %48, %c0_19, %c0_20] : memref<1x4x8x32xf32, #tpu.memory_space<vmem>>, vector<1x1x8x32xf32>
    %50 = vector.shape_cast %49 : vector<1x1x8x32xf32> to vector<8x32xf32>
    %51 = vector.shape_cast %47 : vector<8x32xf32> to vector<1x1x8x32xf32>
    tpu.vector_store %arg6[%c0_18, %48, %c0_19, %c0_20], %51 {strides = array<i32>} : memref<1x4x8x32xf32, #tpu.memory_space<vmem>>, vector<1x1x8x32xf32>,
    %52 = vector.shape_cast %43 : vector<8x1xi1> to vector<8x1xi1>
    %53 = vector.broadcast %52 : vector<8x1xi1> to vector<8x32xi1>
    %54 = arith.select %53, %40, %13 : vector<8x32xi1>, vector<8x32xf32>
    %c1_i32 = arith.constant 1 : i32
    %c0_i32_21 = arith.constant 0 : i32
    %55 = arith.cmpi eq, %arg0, %c0_i32_21 : i32
    %c3_i32_22 = arith.constant 3 : i32
    %56 = arith.subi %c3_i32_22, %c1_i32 : i32
    %57 = arith.select %55, %c1_i32, %56 : i32
    %c0_23 = arith.constant 0 : index
    %58 = arith.index_cast %57 : i32 to index
    %c0_24 = arith.constant 0 : index
    %c0_25 = arith.constant 0 : index
    %59 = vector.load %arg3[%c0_23, %58, %c0_24, %c0_25] : memref<1x4x8x96xf32, #tpu.memory_space<vmem>>, vector<1x1x8x96xf32>
    %60 = vector.shape_cast %59 : vector<1x1x8x96xf32> to vector<8x96xf32>
    %cst_26 = arith.constant dense<0.000000e+00> : vector<8x96xf32>
    %61 = tpu.matmul %54, %4, %cst_26 {dimension_numbers = #tpu.dot_dimension_numbers<[1], [0], [0], [1], [0, 0, 1, 1], [], []>} : vector<8x32xf32>, vector<32x96xf32>, vector<8x96xf32> -> vector<8x96xf32>
    %62 = vector.broadcast %6 : vector<1x96xf32> to vector<8x96xf32>
    %63 = arith.addf %61, %62 : vector<8x96xf32>
    %64 = vector.extract_strided_slice %60 {offsets = [0, 0], sizes = [8, 64], strides = [1, 1]} : vector<8x96xf32> to vector<8x64xf32>
    %65 = vector.extract_strided_slice %63 {offsets = [0, 0], sizes = [8, 64], strides = [1, 1]} : vector<8x96xf32> to vector<8x64xf32>
    %66 = arith.addf %64, %65 : vector<8x64xf32>
    %67 = arith.negf %66 : vector<8x64xf32>
    %68 = math.exp %67 : vector<8x64xf32>
    %cst_27 = arith.constant 1.000000e+00 : f32
    %69 = vector.broadcast %cst_27 : f32 to vector<8x64xf32>
    %70 = arith.addf %69, %68 : vector<8x64xf32>
    %71 = arith.divf %69, %70 : vector<8x64xf32>
    %72 = vector.extract_strided_slice %71 {offsets = [0, 0], sizes = [8, 32], strides = [1, 1]} : vector<8x64xf32> to vector<8x32xf32>
    %73 = vector.extract_strided_slice %71 {offsets = [0, 32], sizes = [8, 32], strides = [1, 1]} : vector<8x64xf32> to vector<8x32xf32>
    %74 = vector.extract_strided_slice %60 {offsets = [0, 64], sizes = [8, 32], strides = [1, 1]} : vector<8x96xf32> to vector<8x32xf32>
    %75 = vector.extract_strided_slice %63 {offsets = [0, 64], sizes = [8, 32], strides = [1, 1]} : vector<8x96xf32> to vector<8x32xf32>
    %76 = arith.mulf %72, %75 : vector<8x32xf32>
    %77 = arith.addf %74, %76 : vector<8x32xf32>
    %78 = math.tanh %77 : vector<8x32xf32>
    %79 = arith.subf %54, %78 : vector<8x32xf32>
    %80 = arith.mulf %73, %79 : vector<8x32xf32>
    %81 = arith.addf %78, %80 : vector<8x32xf32>
    %82 = arith.addi %12, %57 : i32
    %83 = vector.broadcast %82 : i32 to vector<8x1xi32>
    %84 = arith.cmpi slt, %83, %7 : vector<8x1xi32>
    %cst_28 = arith.constant 0.000000e+00 : f32
    %85 = vector.shape_cast %84 : vector<8x1xi1> to vector<8x1xi1>
    %86 = vector.broadcast %85 : vector<8x1xi1> to vector<8x32xi1>
    %87 = vector.broadcast %cst_28 : f32 to vector<8x32xf32>
    %88 = arith.select %86, %81, %87 : vector<8x32xi1>, vector<8x32xf32>
    %c0_29 = arith.constant 0 : index
    %89 = arith.index_cast %57 : i32 to index
    %c0_30 = arith.constant 0 : index
    %c0_31 = arith.constant 0 : index
    %90 = vector.load %arg6[%c0_29, %89, %c0_30, %c0_31] : memref<1x4x8x32xf32, #tpu.memory_space<vmem>>, vector<1x1x8x32xf32>
    %91 = vector.shape_cast %90 : vector<1x1x8x32xf32> to vector<8x32xf32>
    %92 = vector.shape_cast %88 : vector<8x32xf32> to vector<1x1x8x32xf32>
    tpu.vector_store %arg6[%c0_29, %89, %c0_30, %c0_31], %92 {strides = array<i32>} : memref<1x4x8x32xf32, #tpu.memory_space<vmem>>, vector<1x1x8x32xf32>,
    %93 = vector.shape_cast %84 : vector<8x1xi1> to vector<8x1xi1>
    %94 = vector.broadcast %93 : vector<8x1xi1> to vector<8x32xi1>
    %95 = arith.select %94, %81, %54 : vector<8x32xi1>, vector<8x32xf32>
    %c2_i32_32 = arith.constant 2 : i32
    %c0_i32_33 = arith.constant 0 : i32
    %96 = arith.cmpi eq, %arg0, %c0_i32_33 : i32
    %c3_i32_34 = arith.constant 3 : i32
    %97 = arith.subi %c3_i32_34, %c2_i32_32 : i32
    %98 = arith.select %96, %c2_i32_32, %97 : i32
    %c0_35 = arith.constant 0 : index
    %99 = arith.index_cast %98 : i32 to index
    %c0_36 = arith.constant 0 : index
    %c0_37 = arith.constant 0 : index
    %100 = vector.load %arg3[%c0_35, %99, %c0_36, %c0_37] : memref<1x4x8x96xf32, #tpu.memory_space<vmem>>, vector<1x1x8x96xf32>
    %101 = vector.shape_cast %100 : vector<1x1x8x96xf32> to vector<8x96xf32>
    %cst_38 = arith.constant dense<0.000000e+00> : vector<8x96xf32>
    %102 = tpu.matmul %95, %4, %cst_38 {dimension_numbers = #tpu.dot_dimension_numbers<[1], [0], [0], [1], [0, 0, 1, 1], [], []>} : vector<8x32xf32>, vector<32x96xf32>, vector<8x96xf32> -> vector<8x96xf32>
    %103 = vector.broadcast %6 : vector<1x96xf32> to vector<8x96xf32>
    %104 = arith.addf %102, %103 : vector<8x96xf32>
    %105 = vector.extract_strided_slice %101 {offsets = [0, 0], sizes = [8, 64], strides = [1, 1]} : vector<8x96xf32> to vector<8x64xf32>
    %106 = vector.extract_strided_slice %104 {offsets = [0, 0], sizes = [8, 64], strides = [1, 1]} : vector<8x96xf32> to vector<8x64xf32>
    %107 = arith.addf %105, %106 : vector<8x64xf32>
    %108 = arith.negf %107 : vector<8x64xf32>
    %109 = math.exp %108 : vector<8x64xf32>
    %cst_39 = arith.constant 1.000000e+00 : f32
    %110 = vector.broadcast %cst_39 : f32 to vector<8x64xf32>
    %111 = arith.addf %110, %109 : vector<8x64xf32>
    %112 = arith.divf %110, %111 : vector<8x64xf32>
    %113 = vector.extract_strided_slice %112 {offsets = [0, 0], sizes = [8, 32], strides = [1, 1]} : vector<8x64xf32> to vector<8x32xf32>
    %114 = vector.extract_strided_slice %112 {offsets = [0, 32], sizes = [8, 32], strides = [1, 1]} : vector<8x64xf32> to vector<8x32xf32>
    %115 = vector.extract_strided_slice %101 {offsets = [0, 64], sizes = [8, 32], strides = [1, 1]} : vector<8x96xf32> to vector<8x32xf32>
    %116 = vector.extract_strided_slice %104 {offsets = [0, 64], sizes = [8, 32], strides = [1, 1]} : vector<8x96xf32> to vector<8x32xf32>
    %117 = arith.mulf %113, %116 : vector<8x32xf32>
    %118 = arith.addf %115, %117 : vector<8x32xf32>
    %119 = math.tanh %118 : vector<8x32xf32>
    %120 = arith.subf %95, %119 : vector<8x32xf32>
    %121 = arith.mulf %114, %120 : vector<8x32xf32>
    %122 = arith.addf %119, %121 : vector<8x32xf32>
    %123 = arith.addi %12, %98 : i32
    %124 = vector.broadcast %123 : i32 to vector<8x1xi32>
    %125 = arith.cmpi slt, %124, %7 : vector<8x1xi32>
    %cst_40 = arith.constant 0.000000e+00 : f32
    %126 = vector.shape_cast %125 : vector<8x1xi1> to vector<8x1xi1>
    %127 = vector.broadcast %126 : vector<8x1xi1> to vector<8x32xi1>
    %128 = vector.broadcast %cst_40 : f32 to vector<8x32xf32>
    %129 = arith.select %127, %122, %128 : vector<8x32xi1>, vector<8x32xf32>
    %c0_41 = arith.constant 0 : index
    %130 = arith.index_cast %98 : i32 to index
    %c0_42 = arith.constant 0 : index
    %c0_43 = arith.constant 0 : index
    %131 = vector.load %arg6[%c0_41, %130, %c0_42, %c0_43] : memref<1x4x8x32xf32, #tpu.memory_space<vmem>>, vector<1x1x8x32xf32>
    %132 = vector.shape_cast %131 : vector<1x1x8x32xf32> to vector<8x32xf32>
    %133 = vector.shape_cast %129 : vector<8x32xf32> to vector<1x1x8x32xf32>
    tpu.vector_store %arg6[%c0_41, %130, %c0_42, %c0_43], %133 {strides = array<i32>} : memref<1x4x8x32xf32, #tpu.memory_space<vmem>>, vector<1x1x8x32xf32>,
    %134 = vector.shape_cast %125 : vector<8x1xi1> to vector<8x1xi1>
    %135 = vector.broadcast %134 : vector<8x1xi1> to vector<8x32xi1>
    %136 = arith.select %135, %122, %95 : vector<8x32xi1>, vector<8x32xf32>
    %c3_i32_44 = arith.constant 3 : i32
    %c0_i32_45 = arith.constant 0 : i32
    %137 = arith.cmpi eq, %arg0, %c0_i32_45 : i32
    %c3_i32_46 = arith.constant 3 : i32
    %138 = arith.subi %c3_i32_46, %c3_i32_44 : i32
    %139 = arith.select %137, %c3_i32_44, %138 : i32
    %c0_47 = arith.constant 0 : index
    %140 = arith.index_cast %139 : i32 to index
    %c0_48 = arith.constant 0 : index
    %c0_49 = arith.constant 0 : index
    %141 = vector.load %arg3[%c0_47, %140, %c0_48, %c0_49] : memref<1x4x8x96xf32, #tpu.memory_space<vmem>>, vector<1x1x8x96xf32>
    %142 = vector.shape_cast %141 : vector<1x1x8x96xf32> to vector<8x96xf32>
    %cst_50 = arith.constant dense<0.000000e+00> : vector<8x96xf32>
    %143 = tpu.matmul %136, %4, %cst_50 {dimension_numbers = #tpu.dot_dimension_numbers<[1], [0], [0], [1], [0, 0, 1, 1], [], []>} : vector<8x32xf32>, vector<32x96xf32>, vector<8x96xf32> -> vector<8x96xf32>
    %144 = vector.broadcast %6 : vector<1x96xf32> to vector<8x96xf32>
    %145 = arith.addf %143, %144 : vector<8x96xf32>
    %146 = vector.extract_strided_slice %142 {offsets = [0, 0], sizes = [8, 64], strides = [1, 1]} : vector<8x96xf32> to vector<8x64xf32>
    %147 = vector.extract_strided_slice %145 {offsets = [0, 0], sizes = [8, 64], strides = [1, 1]} : vector<8x96xf32> to vector<8x64xf32>
    %148 = arith.addf %146, %147 : vector<8x64xf32>
    %149 = arith.negf %148 : vector<8x64xf32>
    %150 = math.exp %149 : vector<8x64xf32>
    %cst_51 = arith.constant 1.000000e+00 : f32
    %151 = vector.broadcast %cst_51 : f32 to vector<8x64xf32>
    %152 = arith.addf %151, %150 : vector<8x64xf32>
    %153 = arith.divf %151, %152 : vector<8x64xf32>
    %154 = vector.extract_strided_slice %153 {offsets = [0, 0], sizes = [8, 32], strides = [1, 1]} : vector<8x64xf32> to vector<8x32xf32>
    %155 = vector.extract_strided_slice %153 {offsets = [0, 32], sizes = [8, 32], strides = [1, 1]} : vector<8x64xf32> to vector<8x32xf32>
    %156 = vector.extract_strided_slice %142 {offsets = [0, 64], sizes = [8, 32], strides = [1, 1]} : vector<8x96xf32> to vector<8x32xf32>
    %157 = vector.extract_strided_slice %145 {offsets = [0, 64], sizes = [8, 32], strides = [1, 1]} : vector<8x96xf32> to vector<8x32xf32>
    %158 = arith.mulf %154, %157 : vector<8x32xf32>
    %159 = arith.addf %156, %158 : vector<8x32xf32>
    %160 = math.tanh %159 : vector<8x32xf32>
    %161 = arith.subf %136, %160 : vector<8x32xf32>
    %162 = arith.mulf %155, %161 : vector<8x32xf32>
    %163 = arith.addf %160, %162 : vector<8x32xf32>
    %164 = arith.addi %12, %139 : i32
    %165 = vector.broadcast %164 : i32 to vector<8x1xi32>
    %166 = arith.cmpi slt, %165, %7 : vector<8x1xi32>
    %cst_52 = arith.constant 0.000000e+00 : f32
    %167 = vector.shape_cast %166 : vector<8x1xi1> to vector<8x1xi1>
    %168 = vector.broadcast %167 : vector<8x1xi1> to vector<8x32xi1>
    %169 = vector.broadcast %cst_52 : f32 to vector<8x32xf32>
    %170 = arith.select %168, %163, %169 : vector<8x32xi1>, vector<8x32xf32>
    %c0_53 = arith.constant 0 : index
    %171 = arith.index_cast %139 : i32 to index
    %c0_54 = arith.constant 0 : index
    %c0_55 = arith.constant 0 : index
    %172 = vector.load %arg6[%c0_53, %171, %c0_54, %c0_55] : memref<1x4x8x32xf32, #tpu.memory_space<vmem>>, vector<1x1x8x32xf32>
    %173 = vector.shape_cast %172 : vector<1x1x8x32xf32> to vector<8x32xf32>
    %174 = vector.shape_cast %170 : vector<8x32xf32> to vector<1x1x8x32xf32>
    tpu.vector_store %arg6[%c0_53, %171, %c0_54, %c0_55], %174 {strides = array<i32>} : memref<1x4x8x32xf32, #tpu.memory_space<vmem>>, vector<1x1x8x32xf32>,
    %175 = vector.shape_cast %166 : vector<8x1xi1> to vector<8x1xi1>
    %176 = vector.broadcast %175 : vector<8x1xi1> to vector<8x32xi1>
    %177 = arith.select %176, %163, %136 : vector<8x32xi1>, vector<8x32xf32>
    %c4_i32_56 = arith.constant 4 : i32
    %c0_57 = arith.constant 0 : index
    %c0_58 = arith.constant 0 : index
    %178 = vector.load %arg8[%c0_57, %c0_58] : memref<8x32xf32, #tpu.memory_space<vmem>>, vector<8x32xf32>
    tpu.vector_store %arg8[%c0_57, %c0_58], %177 {strides = array<i32>} : memref<8x32xf32, #tpu.memory_space<vmem>>, vector<8x32xf32>,
    %c2_i32_59 = arith.constant 2 : i32
    %179 = arith.cmpi eq, %arg1, %c2_i32_59 : i32
    %180 = arith.extui %179 : i1 to i32
    %c0_i32_60 = arith.constant 0 : i32
    %181 = arith.cmpi ne, %180, %c0_i32_60 : i32
    scf.if %181 {
      %c0_61 = arith.constant 0 : index
      %c0_62 = arith.constant 0 : index
      %c0_63 = arith.constant 0 : index
      %182 = vector.load %arg7[%c0_61, %c0_62, %c0_63] : memref<1x8x32xf32, #tpu.memory_space<vmem>>, vector<1x8x32xf32>
      %183 = vector.shape_cast %182 : vector<1x8x32xf32> to vector<8x32xf32>
      %184 = vector.shape_cast %177 : vector<8x32xf32> to vector<1x8x32xf32>
      tpu.vector_store %arg7[%c0_61, %c0_62, %c0_63], %184 {strides = array<i32>} : memref<1x8x32xf32, #tpu.memory_space<vmem>>, vector<1x8x32xf32>,
    } else {
    }
    return
  }
  func.func @transform_0(%arg0: i32, %arg1: i32) -> (i32, i32) {
    %c0_i32 = arith.constant 0 : i32
    %c0_i32_0 = arith.constant 0 : i32
    %c0_i32_1 = arith.constant 0 : i32
    return %c0_i32, %c0_i32_0 : i32, i32
  }
  func.func @transform_1(%arg0: i32, %arg1: i32) -> (i32, i32, i32, i32) {
    %c2_i32 = arith.constant 2 : i32
    %0 = arith.muli %c2_i32, %arg1 : i32
    %c2_i32_0 = arith.constant 2 : i32
    %1 = arith.subi %c2_i32_0, %0 : i32
    %2 = arith.muli %arg0, %1 : i32
    %3 = arith.addi %arg1, %2 : i32
    %c0_i32 = arith.constant 0 : i32
    %c0_i32_1 = arith.constant 0 : i32
    %c0_i32_2 = arith.constant 0 : i32
    return %arg0, %3, %c0_i32, %c0_i32_1 : i32, i32, i32, i32
  }
  func.func @transform_2(%arg0: i32, %arg1: i32) -> (i32, i32, i32) {
    %c0_i32 = arith.constant 0 : i32
    %c0_i32_0 = arith.constant 0 : i32
    %c0_i32_1 = arith.constant 0 : i32
    return %arg0, %c0_i32, %c0_i32_0 : i32, i32, i32
  }
  func.func @transform_3(%arg0: i32, %arg1: i32) -> (i32, i32, i32) {
    %c0_i32 = arith.constant 0 : i32
    %c0_i32_0 = arith.constant 0 : i32
    %c0_i32_1 = arith.constant 0 : i32
    return %arg0, %c0_i32, %c0_i32_0 : i32, i32, i32
  }
  func.func @transform_4(%arg0: i32, %arg1: i32) -> (i32, i32, i32, i32) {
    %c2_i32 = arith.constant 2 : i32
    %0 = arith.muli %c2_i32, %arg1 : i32
    %c2_i32_0 = arith.constant 2 : i32
    %1 = arith.subi %c2_i32_0, %0 : i32
    %2 = arith.muli %arg0, %1 : i32
    %3 = arith.addi %arg1, %2 : i32
    %c0_i32 = arith.constant 0 : i32
    %c0_i32_1 = arith.constant 0 : i32
    %c0_i32_2 = arith.constant 0 : i32
    return %arg0, %3, %c0_i32, %c0_i32_1 : i32, i32, i32, i32
  }
  func.func @transform_5(%arg0: i32, %arg1: i32) -> (i32, i32, i32) {
    %c0_i32 = arith.constant 0 : i32
    %c0_i32_0 = arith.constant 0 : i32
    %c0_i32_1 = arith.constant 0 : i32
    return %arg0, %c0_i32, %c0_i32_0 : i32, i32, i32
  }
}

</mosaic_0001>

<llo_original>
// kernel: tpu_custom_call.1
$region0: #{tpu_custom_call.1}
  #allocation0 [shape = 'u32[]', space=smem, size = 0x4, offset = 0x4, fixed_abs, tag = 'smem constant byte address 0x4 - core index']
  #allocation1 [shape = 'u32[144,128]{1,0:T(1,128)}', space=vmem, size = 0x12000, scoped, tag = 'internal scratch']
  #allocation2 [shape = 'f32[8,32]{1,0:T(8,128)}', space=vmem, size = 0x1000, scoped, tag = 'scratch operand']
  %s0 = inlined_call_operand.vmem [shape: s32[8,1], index: 0, kind: input, shape index: {}]
  %s1 = inlined_call_operand.hbm [shape: f32[2,12,8,96], index: 1, kind: input, shape index: {}]
  %s2 = inlined_call_operand.hbm [shape: f32[2,32,96], index: 2, kind: input, shape index: {}]
  %s3 = inlined_call_operand.vmem [shape: f32[2,1,96], index: 3, kind: input, shape index: {}]
  %s4 = inlined_call_operand.hbm [shape: f32[2,12,8,32], index: 4, kind: output, shape index: {0}]
  %s5 = inlined_call_operand.hbm [shape: f32[2,8,32], index: 5, kind: output, shape index: {1}]
  %6 = xla_tuple %s4, %s5
  %s7 = sld [smem:[#allocation0]]
  $region73: #{tpu_custom_call.1} parent=0
    _
  %s9 = ssub.s32 1, %s7
  %s10 = scalar_select 0, %s9, %s7
  $region1: #{tpu_custom_call.1} parent=0
    #allocation3 [shape = 'u8[32768]{0}', space=vmem, size = 0x8000, scoped, tag = 'input window, operand 1']
    #allocation4 [shape = 's32[2]{0}', space=sflag, size = 0x8, scoped, tag = 'scoped memory for tpu_custom_call.1']
    #allocation5 [shape = 's32[2]{0}', space=sflag, size = 0x8, scoped, tag = 'scoped memory for tpu_custom_call.1']
    #allocation6 [shape = 'u8[32768]{0}', space=vmem, size = 0x8000, scoped, tag = 'input window, operand 2']
    #allocation7 [shape = 's32[2]{0}', space=sflag, size = 0x8, scoped, tag = 'scoped memory for tpu_custom_call.1']
    #allocation8 [shape = 'u8[32768]{0}', space=vmem, size = 0x8000, scoped, tag = 'output window, operand 0']
    #allocation9 [shape = 'u8[8192]{0}', space=vmem, size = 0x2000, scoped, tag = 'output window, operand 1']
    #allocation10 [shape = 's32[2]{0}', space=sflag, size = 0x8, scoped, tag = 'scoped memory for tpu_custom_call.1']
    %11 = vsyncpa [#allocation4], 0
    %s12 = scalar_lea.sflag [#allocation4], 1
    %13 = vsyncpa %s12, 0
    %14 = vsyncpa [#allocation7], 0
    %s15 = scalar_lea.sflag [#allocation7], 1
    %16 = vsyncpa %s15, 0
    %17 = vsyncpa [#allocation5], 0
    %s18 = scalar_lea.sflag [#allocation5], 1
    %19 = vsyncpa %s18, 0
    %20 = vsyncpa [#allocation10], 0
    %s21 = scalar_lea.sflag [#allocation10], 1
    %22 = vsyncpa %s21, 0
    loop: start=0, step=1, limit=8
    $region2: #{tpu_custom_call.1} parent=1 // loop_pre_header
      _
    $region3: #{tpu_custom_call.1} parent=1 // loop_header
      %s24 = sphi 0, %s28
      %p25 = scmp.ge.s32.totalorder %s24, 8
      %s31 = sphi 0, %s43
      %s32 = sphi 0, %s39
      %s33 = sphi 0, %s31
      %s34 = sphi 0, %s32
      %s35 = sphi 0, %s33
      %s36 = sphi 0, %s34
      %s44 = sphi 0, %s44
      %s46 = sphi 0, %s44
      %s47 = sphi 0, %s46
      %s61 = sphi 0, %s47
      %s77 = sphi 0, %s79
      %s80 = sphi 0, %s77
      %s81 = sphi 0, %s80
      %s97 = sphi 0, %s81
      %s103 = sphi 0, %s105
      %s106 = sphi 0, %s103
      %s107 = sphi 0, %s106
      %s123 = sphi 0, %s107
      %s129 = sphi 0, %s131
      %s132 = sphi 0, %s129
      %s133 = sphi 0, %s132
      %s149 = sphi 0, %s133
      %s165 = sphi 0, %s167
      %s168 = sphi 0, %s165
      %s169 = sphi 0, %s168
      %s185 = sphi 0, %s169
      %s191 = sphi 0, %s193
      %s194 = sphi 0, %s191
      %s195 = sphi 0, %s194
      %s211 = sphi 0, %s195
    $region4: #{tpu_custom_call.1} parent=1 // loop_header_branch
      %27 = sbr.rel (%p25) target = $region8
    $region5: #{tpu_custom_call.1} parent=1 // loop_body
      %s29 = ssub.s32 %s24, 1
      %s30 = ssub.s32 %s24, 2
      %s37 = sadd.s32 1, %s32
      %p38 = scmp.ge.s32.totalorder %s37, 3
      %s39 = scalar_select %p38, 0, %s37
      %s40 = sadd.s32 1, %s31
      %s41 = scalar_select %p38, %s40, %s31
      %p42 = scmp.ge.s32.totalorder %s41, 2
      %s43 = scalar_select %p42, 0, %s41
      %s45 = sadd.s32 %s44, 1
      %p48 = scmp.eq.s32.totalorder %s24, 5
      %p49 = scmp.ne.s32.totalorder %s44, %s46
      %p50 = scmp.eq.s32.totalorder %s24, 0
      %p51 = por %p49, %p50
      %p52 = scmp.ne.s32.totalorder %s44, %s46
      %p53 = scmp.eq.s32.totalorder %s29, 5
      %p54 = por %p52, %p53
      %p55 = scmp.ne.s32.totalorder %s46, %s47
      %p56 = scmp.eq.s32.totalorder %s29, 0
      %p57 = por %p55, %p56
      %p58 = scmp.ne.s32.totalorder %s46, %s47
      %p59 = scmp.eq.s32.totalorder %s30, 5
      %p60 = por %p58, %p59
      %p62 = scmp.ne.s32.totalorder %s47, %s61
      %p63 = scmp.eq.s32.totalorder %s30, 0
      %p64 = por %p62, %p63
      %s65 = smul.u32 %s32, 2
      %s66 = ssub.s32 2, %s65
      %s67 = smul.u32 %s31, %s66
      %s68 = sadd.s32 %s32, %s67
      %s69 = smul.u32 %s39, 2
      %s70 = ssub.s32 2, %s69
      %s71 = smul.u32 %s43, %s70
      %s72 = sadd.s32 %s39, %s71
      %s73 = ssub.s32 %s31, %s43
      %s74 = ssub.s32 %s68, %s72
      %s75 = sor.u32 %s73, %s74
      %p76 = scmp.eq.s32.totalorder %s75, 0
      %s78 = sadd.s32 %s77, 1
      %s79 = scalar_select %p76, %s77, %s78
      %p82 = pneg %p76
      %p83 = scmp.eq.s32.totalorder %s24, 5
      %p84 = por %p82, %p83
      %p85 = scmp.ne.s32.totalorder %s77, %s80
      %p86 = scmp.eq.s32.totalorder %s24, 0
      %p87 = por %p85, %p86
      %p88 = scmp.ne.s32.totalorder %s77, %s80
      %p89 = scmp.eq.s32.totalorder %s29, 5
      %p90 = por %p88, %p89
      %p91 = scmp.ne.s32.totalorder %s80, %s81
      %p92 = scmp.eq.s32.totalorder %s29, 0
      %p93 = por %p91, %p92
      %p94 = scmp.ne.s32.totalorder %s80, %s81
      %p95 = scmp.eq.s32.totalorder %s30, 5
      %p96 = por %p94, %p95
      %p98 = scmp.ne.s32.totalorder %s81, %s97
      %p99 = scmp.eq.s32.totalorder %s30, 0
      %p100 = por %p98, %p99
      %s101 = ssub.s32 %s31, %s43
      %p102 = scmp.eq.s32.totalorder %s101, 0
      %s104 = sadd.s32 %s103, 1
      %s105 = scalar_select %p102, %s103, %s104
      %p108 = pneg %p102
      %p109 = scmp.eq.s32.totalorder %s24, 5
      %p110 = por %p108, %p109
      %p111 = scmp.ne.s32.totalorder %s103, %s106
      %p112 = scmp.eq.s32.totalorder %s24, 0
      %p113 = por %p111, %p112
      %p114 = scmp.ne.s32.totalorder %s103, %s106
      %p115 = scmp.eq.s32.totalorder %s29, 5
      %p116 = por %p114, %p115
      %p117 = scmp.ne.s32.totalorder %s106, %s107
      %p118 = scmp.eq.s32.totalorder %s29, 0
      %p119 = por %p117, %p118
      %p120 = scmp.ne.s32.totalorder %s106, %s107
      %p121 = scmp.eq.s32.totalorder %s30, 5
      %p122 = por %p120, %p121
      %p124 = scmp.ne.s32.totalorder %s107, %s123
      %p125 = scmp.eq.s32.totalorder %s30, 0
      %p126 = por %p124, %p125
      %s127 = ssub.s32 %s31, %s43
      %p128 = scmp.eq.s32.totalorder %s127, 0
      %s130 = sadd.s32 %s129, 1
      %s131 = scalar_select %p128, %s129, %s130
      %p134 = pneg %p128
      %p135 = scmp.eq.s32.totalorder %s24, 5
      %p136 = por %p134, %p135
      %p137 = scmp.ne.s32.totalorder %s129, %s132
      %p138 = scmp.eq.s32.totalorder %s24, 0
      %p139 = por %p137, %p138
      %p140 = scmp.ne.s32.totalorder %s129, %s132
      %p141 = scmp.eq.s32.totalorder %s29, 5
      %p142 = por %p140, %p141
      %p143 = scmp.ne.s32.totalorder %s132, %s133
      %p144 = scmp.eq.s32.totalorder %s29, 0
      %p145 = por %p143, %p144
      %p146 = scmp.ne.s32.totalorder %s132, %s133
      %p147 = scmp.eq.s32.totalorder %s30, 5
      %p148 = por %p146, %p147
      %p150 = scmp.ne.s32.totalorder %s133, %s149
      %p151 = scmp.eq.s32.totalorder %s30, 0
      %p152 = por %p150, %p151
      %s153 = smul.u32 %s32, 2
      %s154 = ssub.s32 2, %s153
      %s155 = smul.u32 %s31, %s154
      %s156 = sadd.s32 %s32, %s155
      %s157 = smul.u32 %s39, 2
      %s158 = ssub.s32 2, %s157
      %s159 = smul.u32 %s43, %s158
      %s160 = sadd.s32 %s39, %s159
      %s161 = ssub.s32 %s31, %s43
      %s162 = ssub.s32 %s156, %s160
      %s163 = sor.u32 %s161, %s162
      %p164 = scmp.eq.s32.totalorder %s163, 0
      %s166 = sadd.s32 %s165, 1
      %s167 = scalar_select %p164, %s165, %s166
      %p170 = pneg %p164
      %p171 = scmp.eq.s32.totalorder %s24, 5
      %p172 = por %p170, %p171
      %p173 = scmp.ne.s32.totalorder %s165, %s168
      %p174 = scmp.eq.s32.totalorder %s24, 0
      %p175 = por %p173, %p174
      %p176 = scmp.ne.s32.totalorder %s165, %s168
      %p177 = scmp.eq.s32.totalorder %s29, 5
      %p178 = por %p176, %p177
      %p179 = scmp.ne.s32.totalorder %s168, %s169
      %p180 = scmp.eq.s32.totalorder %s29, 0
      %p181 = por %p179, %p180
      %p182 = scmp.ne.s32.totalorder %s168, %s169
      %p183 = scmp.eq.s32.totalorder %s30, 5
      %p184 = por %p182, %p183
      %p186 = scmp.ne.s32.totalorder %s169, %s185
      %p187 = scmp.eq.s32.totalorder %s30, 0
      %p188 = por %p186, %p187
      %s189 = ssub.s32 %s31, %s43
      %p190 = scmp.eq.s32.totalorder %s189, 0
      %s192 = sadd.s32 %s191, 1
      %s193 = scalar_select %p190, %s191, %s192
      %p196 = pneg %p190
      %p197 = scmp.eq.s32.totalorder %s24, 5
      %p198 = por %p196, %p197
      %p199 = scmp.ne.s32.totalorder %s191, %s194
      %p200 = scmp.eq.s32.totalorder %s24, 0
      %p201 = por %p199, %p200
      %p202 = scmp.ne.s32.totalorder %s191, %s194
      %p203 = scmp.eq.s32.totalorder %s29, 5
      %p204 = por %p202, %p203
      %p205 = scmp.ne.s32.totalorder %s194, %s195
      %p206 = scmp.eq.s32.totalorder %s29, 0
      %p207 = por %p205, %p206
      %p208 = scmp.ne.s32.totalorder %s194, %s195
      %p209 = scmp.eq.s32.totalorder %s30, 5
      %p210 = por %p208, %p209
      %p212 = scmp.ne.s32.totalorder %s195, %s211
      %p213 = scmp.eq.s32.totalorder %s30, 0
      %p214 = por %p212, %p213
      %p215 = scmp.le.s32.totalorder 1, %s24
      %p216 = scmp.lt.s32.totalorder %s24, 7
      %p217 = pnand %p215, %p216
      %p218 = pneg %p217
      // Predicated region
      $region9: #{tpu_custom_call.1} parent=5 // pred_check
        _
      $region10: #{tpu_custom_call.1} parent=5 // pred_check_branch
        %220 = sbr.rel (%p217) target = $region12
      $region11: #{tpu_custom_call.1} parent=5 // pred_region
        %s221 = ssub.s32 %s24, 1
        // Predicated region
        $region13: #{tpu_custom_call.1} parent=11 // pred_check
          %p222 = pneg %p57
        $region14: #{tpu_custom_call.1} parent=11 // pred_check_branch
          %224 = sbr.rel (%p222) target = $region16
        $region15: #{tpu_custom_call.1} parent=11 // pred_region
          _
        $region16: #{tpu_custom_call.1} parent=11 // pred_fallthru
          _
      $region12: #{tpu_custom_call.1} parent=5 // pred_fallthru
        _
      %p225 = scmp.lt.s32.totalorder %s24, 6
      // Predicated region
      $region17: #{tpu_custom_call.1} parent=5 // pred_check
        %p226 = pneg %p225
      $region18: #{tpu_custom_call.1} parent=5 // pred_check_branch
        %228 = sbr.rel (%p226) target = $region20
      $region19: #{tpu_custom_call.1} parent=5 // pred_region
        // Predicated region
        $region21: #{tpu_custom_call.1} parent=19 // pred_check
          %p229 = pneg %p87
        $region22: #{tpu_custom_call.1} parent=19 // pred_check_branch
          %231 = sbr.rel (%p229) target = $region24
        $region23: #{tpu_custom_call.1} parent=19 // pred_region
          %s232 = sand.u32 %s77, 1
          %s233 = scalar_lea.sflag [#allocation4], %s232
          %s234 = sand.u32 %s77, 1
          %s235 = smul.addr %s234, 32
          %s236 = scalar_lea.vmem [#allocation3], %s235
          %s237 = smul.u32 %s32, 2
          %s238 = ssub.s32 2, %s237
          %s239 = smul.u32 %s31, %s238
          %s240 = sadd.s32 %s32, %s239
          %s241 = smul.u32 4, %s240
          %s243 = ssub.s32 512, 512
          %244 = vsyncadd %s233, %s243
          %s245 = smul.addr %s31, 12
          %s246 = sadd.s32 %s241, %s245
          %s247 = smul.addr %s246, 128
          %s248 = scalar_lea.hbm %s1, %s247
          %s249 = sshll.u32 %s236, 4
          %s250 = int_to_ptr.vmem [resolvable:$true] %s249
          %255 = dma.hbm_to_vmem [thread:$0]  %s248, 512, %s250, %s233, 128, 128, 8
        $region24: #{tpu_custom_call.1} parent=19 // pred_fallthru
          _
        // Predicated region
        $region25: #{tpu_custom_call.1} parent=19 // pred_check
          %p256 = pneg %p113
        $region26: #{tpu_custom_call.1} parent=19 // pred_check_branch
          %258 = sbr.rel (%p256) target = $region28
        $region27: #{tpu_custom_call.1} parent=19 // pred_region
          %s259 = sand.u32 %s103, 1
          %s260 = scalar_lea.sflag [#allocation7], %s259
          %s261 = sand.u32 %s103, 1
          %s262 = smul.addr %s261, 32
          %s263 = scalar_lea.vmem [#allocation6], %s262
          %s265 = ssub.s32 512, 512
          %266 = vsyncadd %s260, %s265
          %s267 = smul.addr %s31, 4
          %s268 = smul.addr %s267, 128
          %s269 = scalar_lea.hbm %s2, %s268
          %s270 = sshll.u32 %s263, 4
          %s271 = int_to_ptr.vmem [resolvable:$true] %s270
          %276 = dma.hbm_to_vmem [thread:$0]  %s269, 512, %s271, %s260, 128, 128, 8
        $region28: #{tpu_custom_call.1} parent=19 // pred_fallthru
          _
        // Predicated region
        $region29: #{tpu_custom_call.1} parent=19 // pred_check
          %p277 = pneg %p139
        $region30: #{tpu_custom_call.1} parent=19 // pred_check_branch
          %279 = sbr.rel (%p277) target = $region32
        $region31: #{tpu_custom_call.1} parent=19 // pred_region
          %p280 = scmp.lt.s32.totalorder %s31, 1
          %s281 = scalar_select %p280, %s31, 1
          %s282 = scalar_lea.vmem %s3, %s281
        $region32: #{tpu_custom_call.1} parent=19 // pred_fallthru
          _
      $region20: #{tpu_custom_call.1} parent=5 // pred_fallthru
        _
      %p283 = scmp.le.s32.totalorder 1, %s24
      %p284 = scmp.lt.s32.totalorder %s24, 7
      %p285 = pnand %p283, %p284
      %p286 = pneg %p285
      // Predicated region
      $region33: #{tpu_custom_call.1} parent=5 // pred_check
        _
      $region34: #{tpu_custom_call.1} parent=5 // pred_check_branch
        %288 = sbr.rel (%p285) target = $region36
      $region35: #{tpu_custom_call.1} parent=5 // pred_region
        %s289 = ssub.s32 %s24, 1
        %s290 = sand.u32 %s80, 1
        %s291 = scalar_lea.sflag [#allocation4], %s290
        %s292 = sand.u32 %s80, 1
        %s293 = smul.addr %s292, 32
        %s294 = scalar_lea.vmem [#allocation3], %s293
        // Predicated region
        $region37: #{tpu_custom_call.1} parent=35 // pred_check
          %p295 = pneg %p93
        $region38: #{tpu_custom_call.1} parent=35 // pred_check_branch
          %297 = sbr.rel (%p295) target = $region40
        $region39: #{tpu_custom_call.1} parent=35 // pred_region
          %298 = dma.done %s291, 512
        $region40: #{tpu_custom_call.1} parent=35 // pred_fallthru
          _
        %s299 = sand.u32 %s106, 1
        %s300 = scalar_lea.sflag [#allocation7], %s299
        %s301 = sand.u32 %s106, 1
        %s302 = smul.addr %s301, 32
        %s303 = scalar_lea.vmem [#allocation6], %s302
        // Predicated region
        $region41: #{tpu_custom_call.1} parent=35 // pred_check
          %p304 = pneg %p119
        $region42: #{tpu_custom_call.1} parent=35 // pred_check_branch
          %306 = sbr.rel (%p304) target = $region44
        $region43: #{tpu_custom_call.1} parent=35 // pred_region
          %307 = dma.done %s300, 512
        $region44: #{tpu_custom_call.1} parent=35 // pred_fallthru
          _
        %p308 = pneg %p57
        %p309 = pneg %p54
        %s310 = sand.u32 %s80, 1
        %s311 = scalar_lea.sflag [#allocation4], %s310
        %s312 = sand.u32 %s80, 1
        %s313 = smul.addr %s312, 32
        %s314 = scalar_lea.vmem [#allocation3], %s313
        %p315 = pneg %p93
        %p316 = pneg %p90
        %s317 = sand.u32 %s106, 1
        %s318 = scalar_lea.sflag [#allocation7], %s317
        %s319 = sand.u32 %s106, 1
        %s320 = smul.addr %s319, 32
        %s321 = scalar_lea.vmem [#allocation6], %s320
        %p322 = pneg %p119
        %p323 = pneg %p116
        %p324 = scmp.lt.s32.totalorder %s33, 1
        %s325 = scalar_select %p324, %s33, 1
        %s326 = scalar_lea.vmem %s3, %s325
        %p327 = pneg %p145
        %p328 = pneg %p142
        %p329 = pneg %p181
        %p330 = pneg %p178
        %s331 = sand.u32 %s168, 1
        %s332 = scalar_lea.sflag [#allocation5], %s331
        %s333 = sand.u32 %s168, 1
        %s334 = smul.addr %s333, 32
        %s335 = scalar_lea.vmem [#allocation8], %s334
        %p336 = pneg %p207
        %p337 = pneg %p204
        %s338 = sand.u32 %s194, 1
        %s339 = scalar_lea.sflag [#allocation10], %s338
        %s340 = sand.u32 %s194, 1
        %s341 = smul.addr %s340, 8
        %s342 = scalar_lea.vmem [#allocation9], %s341
        %s343 = smul.u32 %s34, 2
        %s344 = ssub.s32 2, %s343
        %s345 = smul.u32 %s33, %s344
        %s346 = sadd.s32 %s34, %s345
        %s347 = smul.u32 4, %s346
        %p348 = scmp.lt.s32.totalorder %s33, 1
        %s349 = scalar_select %p348, %s33, 1
        %s350 = scalar_lea.vmem %s3, %s349
        %s351 = smul.u32 %s34, 2
        %s352 = ssub.s32 2, %s351
        %s353 = smul.u32 %s33, %s352
        %s354 = sadd.s32 %s34, %s353
        %s355 = smul.u32 4, %s354
        %p356 = scmp.eq.s32.totalorder %s34, 0
        // Predicated region
        $region45: #{tpu_custom_call.1} parent=35 // pred_check
          %p357 = pneg %p356
        $region46: #{tpu_custom_call.1} parent=35 // pred_check_branch
          %359 = sbr.rel (%p357) target = $region48
        $region47: #{tpu_custom_call.1} parent=35 // pred_region
          %vm360 = vcmask 261120
          %361 = vst.msk [vmem:[#allocation2] sm:$0xff] %vm360, 0.0
        $region48: #{tpu_custom_call.1} parent=35 // pred_fallthru
          _
        %v362 = vld [vmem:[%s303] sm:$0xff]
        %v363 = vld [vmem:[%s303 + $0x8] sm:$0xff]
        %v364 = vld [vmem:[%s303 + $0x10] sm:$0xff]
        %v365 = vld [vmem:[%s303 + $0x18] sm:$0xff]
        %v366 = vld [vmem:[%s350] sm:$0x1]
        %v367 = vld [vmem:[%s0] sm:$0xff]
        %s368 = smul.u32 %s34, 2
        %s369 = ssub.s32 2, %s368
        %s370 = smul.u32 %s33, %s369
        %s371 = sadd.s32 %s34, %s370
        %s372 = smul.u32 %s371, 4
        %v373 = vld [vmem:[#allocation2] sm:$0xff]
        %p374 = scmp.eq.s32.totalorder %s33, 0
        %s375 = scalar_select %p374, 0, 3
        %s376 = smul.u32 %s375, 8
        %s377 = scalar_lea.vmem %s294, %s376 [#allocation3]
        %v378 = vld [vmem:[%s377] sm:$0xff]
        %v380 = vlaneseq
        %v381 = vshrl.u32 %v380, 7
        %v382 = vsub.s32 0, %v381
        %v383 = vrot.slane %v366, %v382
        %vm385 = vcmask 261120
        %v387 = vsel %vm385, %v373, 0
        %389 = vmatprep.subr.mxu0 0.0
        %390 = vmatpush1.msra.mxu0 %v362
        %391 = vmatprep.subr.mxu0 0.0
        %392 = vmatpush1.msra.mxu0 %v363
        %393 = vmatprep.subr.mxu0 0.0
        %394 = vmatpush1.msra.mxu0 %v364
        %395 = vmatprep.subr.mxu0 0.0
        %396 = vmatpush1.msra.mxu0 %v365
        %397 = vmatprep.subr.mxu0 0.0
        %398 = vmatpush1.msra.mxu0 0.0
        %399 = vmatprep.subr.mxu0 0.0
        %400 = vmatpush1.msra.mxu0 0.0
        %401 = vmatprep.subr.mxu0 0.0
        %402 = vmatpush1.msra.mxu0 0.0
        %403 = vmatprep.subr.mxu0 0.0
        %404 = vmatpush1.msra.mxu0 0.0
        %405 = vmatprep.subr.mxu0 0.0
        %406 = vmatpush1.msra.mxu0 0.0
        %407 = vmatprep.subr.mxu0 0.0
        %408 = vmatpush1.msra.mxu0 0.0
        %409 = vmatprep.subr.mxu0 0.0
        %410 = vmatpush1.msra.mxu0 0.0
        %411 = vmatprep.subr.mxu0 0.0
        %412 = vmatpush1.msra.mxu0 0.0
        %413 = vmatprep.subr.mxu0 0.0
        %414 = vmatpush1.msra.mxu0 0.0
        %415 = vmatprep.subr.mxu0 0.0
        %416 = vmatpush1.msra.mxu0 0.0
        %417 = vmatprep.subr.mxu0 0.0
        %418 = vmatpush1.msra.mxu0 0.0
        %419 = vmatprep.subr.mxu0 0.0
        %420 = vmatpush1.msra.mxu0 0.0
        %421 = vmatprep.subr.mxu0 0.0
        %422 = vmatpush1.msra.mxu0 0.0
        %423 = vmatprep.subr.mxu0 0.0
        %424 = vmatpush1.msra.mxu0 0.0
        %425 = vmatprep.subr.mxu0 0.0
        %426 = vmatpush1.msra.mxu0 0.0
        %427 = vmatprep.subr.mxu0 0.0
        %428 = vmatpush1.msra.mxu0 0.0
        %429 = vmatprep.subr.mxu0 0.0
        %430 = vmatpush1.msra.mxu0 0.0
        %431 = vmatprep.subr.mxu0 0.0
        %432 = vmatpush1.msra.mxu0 0.0
        %433 = vmatprep.subr.mxu0 0.0
        %434 = vmatpush1.msra.mxu0 0.0
        %435 = vmatprep.subr.mxu0 0.0
        %436 = vmatpush1.msra.mxu0 0.0
        %437 = vmatprep.subr.mxu0 0.0
        %438 = vmatpush1.msra.mxu0 0.0
        %439 = vmatprep.subr.mxu0 0.0
        %440 = vmatpush1.msra.mxu0 0.0
        %441 = vmatprep.subr.mxu0 0.0
        %442 = vmatpush1.msra.mxu0 0.0
        %443 = vmatprep.subr.mxu0 0.0
        %444 = vmatpush1.msra.mxu0 0.0
        %445 = vmatprep.subr.mxu0 0.0
        %446 = vmatpush1.msra.mxu0 0.0
        %447 = vmatprep.subr.mxu0 0.0
        %448 = vmatpush1.msra.mxu0 0.0
        %449 = vmatprep.subr.mxu0 0.0
        %450 = vmatpush1.msra.mxu0 0.0
        %451 = vmatprep.subr.mxu0 0.0
        %452 = vmatpush1.msra.mxu0 0.0
        %453 = vmatprep.mubr.f32.mxu0 0.0
        %454 = vmatmul.mubr.f32.gmra.mrb[0].mxu0 %v387
        %v455 = vpop.f32.mrb[0].mxu0
        %v456 = vadd.f32 %v383, %v455
        %v457 = vpop.f32.mrb[0].mxu0
        %458 = vdwg.mxu0
        %v459 = vadd.f32 %v378, %v456
        %v460 = vxor.u32 %v459, 2147483648
        %v461 = vmul.f32 %v460, 1.442695
        %v462 = vpow.pop %v461
        %v463 = vadd.f32 %v462, 1.0
        %v464 = vrcp.pop %v463
        %v465 = vmul.f32 1.0, %v464
        %467 = vrot.lane.b32.xlu0 %v456, 64
        %v468 = vpop.permute.xlu0 %467
        %v470 = vmul.f32 %v465, %v468
        %472 = vrot.lane.b32.xlu0 %v470, 64
        %v473 = vpop.permute.xlu0 %472
        %v475 = vadd.f32 %v378, %v473
        %v476 = vtanh.pop %v475
        %478 = vrot.lane.b32.xlu0 %v476, 64
        %v479 = vpop.permute.xlu0 %478
        %v481 = vsub.f32 %v373, %v479
        %483 = vrot.lane.b32.xlu0 %v481, 32
        %v484 = vpop.permute.xlu0 %483
        %v486 = vmul.f32 %v465, %v484
        %488 = vrot.lane.b32.xlu0 %v486, 32
        %v489 = vpop.permute.xlu0 %488
        %v491 = vadd.f32 %v476, %v489
        %s492 = sadd.s32 %s372, %s375
        %v493 = vstv %s492
        %vm494 = vcmp.lt.s32.totalorder %v493, %v367
        %v495 = vsel %vm494, 1, 0
        %496 = vset.pattern.permute.xlu0 0
        %497 = vperm.xlu0 %496, %v495
        %v498 = vpop.permute.xlu0 %497
        %vm499 = vcmp.eq.s32.totalorder %v498, 1
        %v500 = vsel %vm499, %v491, 0.0
        %502 = vrot.lane.b32.xlu0 %v500, 64
        %v503 = vpop.permute.xlu0 %502
        %s505 = scalar_lea.vmem %s335, %s376 [#allocation8]
        %506 = vst.msk [vmem:[%s505] sm:$0xff] %vm385, %v503
        %507 = vrot.lane.b32.xlu0 %v373, 64
        %v508 = vpop.permute.xlu0 %507
        %v510 = vsel %vm499, %v491, %v508
        %s511 = scalar_select %p374, 1, 2
        %s512 = smul.u32 %s511, 8
        %s513 = scalar_lea.vmem %s294, %s512 [#allocation3]
        %v514 = vld [vmem:[%s513] sm:$0xff]
        %516 = vrot.lane.b32.xlu0 %v510, 64
        %v517 = vpop.permute.xlu0 %516
        %v518 = vsel %vm385, %v517, 0
        %520 = vmatprep.subr.mxu0 0.0
        %521 = vmatpush1.msra.mxu0 %v362
        %522 = vmatprep.subr.mxu0 0.0
        %523 = vmatpush1.msra.mxu0 %v363
        %524 = vmatprep.subr.mxu0 0.0
        %525 = vmatpush1.msra.mxu0 %v364
        %526 = vmatprep.subr.mxu0 0.0
        %527 = vmatpush1.msra.mxu0 %v365
        %528 = vmatprep.subr.mxu0 0.0
        %529 = vmatpush1.msra.mxu0 0.0
        %530 = vmatprep.subr.mxu0 0.0
        %531 = vmatpush1.msra.mxu0 0.0
        %532 = vmatprep.subr.mxu0 0.0
        %533 = vmatpush1.msra.mxu0 0.0
        %534 = vmatprep.subr.mxu0 0.0
        %535 = vmatpush1.msra.mxu0 0.0
        %536 = vmatprep.subr.mxu0 0.0
        %537 = vmatpush1.msra.mxu0 0.0
        %538 = vmatprep.subr.mxu0 0.0
        %539 = vmatpush1.msra.mxu0 0.0
        %540 = vmatprep.subr.mxu0 0.0
        %541 = vmatpush1.msra.mxu0 0.0
        %542 = vmatprep.subr.mxu0 0.0
        %543 = vmatpush1.msra.mxu0 0.0
        %544 = vmatprep.subr.mxu0 0.0
        %545 = vmatpush1.msra.mxu0 0.0
        %546 = vmatprep.subr.mxu0 0.0
        %547 = vmatpush1.msra.mxu0 0.0
        %548 = vmatprep.subr.mxu0 0.0
        %549 = vmatpush1.msra.mxu0 0.0
        %550 = vmatprep.subr.mxu0 0.0
        %551 = vmatpush1.msra.mxu0 0.0
        %552 = vmatprep.subr.mxu0 0.0
        %553 = vmatpush1.msra.mxu0 0.0
        %554 = vmatprep.subr.mxu0 0.0
        %555 = vmatpush1.msra.mxu0 0.0
        %556 = vmatprep.subr.mxu0 0.0
        %557 = vmatpush1.msra.mxu0 0.0
        %558 = vmatprep.subr.mxu0 0.0
        %559 = vmatpush1.msra.mxu0 0.0
        %560 = vmatprep.subr.mxu0 0.0
        %561 = vmatpush1.msra.mxu0 0.0
        %562 = vmatprep.subr.mxu0 0.0
        %563 = vmatpush1.msra.mxu0 0.0
        %564 = vmatprep.subr.mxu0 0.0
        %565 = vmatpush1.msra.mxu0 0.0
        %566 = vmatprep.subr.mxu0 0.0
        %567 = vmatpush1.msra.mxu0 0.0
        %568 = vmatprep.subr.mxu0 0.0
        %569 = vmatpush1.msra.mxu0 0.0
        %570 = vmatprep.subr.mxu0 0.0
        %571 = vmatpush1.msra.mxu0 0.0
        %572 = vmatprep.subr.mxu0 0.0
        %573 = vmatpush1.msra.mxu0 0.0
        %574 = vmatprep.subr.mxu0 0.0
        %575 = vmatpush1.msra.mxu0 0.0
        %576 = vmatprep.subr.mxu0 0.0
        %577 = vmatpush1.msra.mxu0 0.0
        %578 = vmatprep.subr.mxu0 0.0
        %579 = vmatpush1.msra.mxu0 0.0
        %580 = vmatprep.subr.mxu0 0.0
        %581 = vmatpush1.msra.mxu0 0.0
        %582 = vmatprep.subr.mxu0 0.0
        %583 = vmatpush1.msra.mxu0 0.0
        %584 = vmatprep.mubr.f32.mxu0 0.0
        %585 = vmatmul.mubr.f32.gmra.mrb[0].mxu0 %v518
        %v586 = vpop.f32.mrb[0].mxu0
        %v587 = vadd.f32 %v383, %v586
        %v588 = vpop.f32.mrb[0].mxu0
        %589 = vdwg.mxu0
        %v590 = vadd.f32 %v514, %v587
        %v591 = vxor.u32 %v590, 2147483648
        %v592 = vmul.f32 %v591, 1.442695
        %v593 = vpow.pop %v592
        %v594 = vadd.f32 %v593, 1.0
        %v595 = vrcp.pop %v594
        %v596 = vmul.f32 1.0, %v595
        %598 = vrot.lane.b32.xlu0 %v587, 64
        %v599 = vpop.permute.xlu0 %598
        %v601 = vmul.f32 %v596, %v599
        %603 = vrot.lane.b32.xlu0 %v601, 64
        %v604 = vpop.permute.xlu0 %603
        %v606 = vadd.f32 %v514, %v604
        %v607 = vtanh.pop %v606
        %v608 = vsub.f32 %v510, %v607
        %610 = vrot.lane.b32.xlu0 %v608, 96
        %v611 = vpop.permute.xlu0 %610
        %v613 = vmul.f32 %v596, %v611
        %615 = vrot.lane.b32.xlu0 %v613, 32
        %v616 = vpop.permute.xlu0 %615
        %v618 = vadd.f32 %v607, %v616
        %s619 = sadd.s32 %s372, %s511
        %v620 = vstv %s619
        %vm621 = vcmp.lt.s32.totalorder %v620, %v367
        %v622 = vsel %vm621, 1, 0
        %623 = vset.pattern.permute.xlu0 0
        %624 = vperm.xlu0 %623, %v622
        %v625 = vpop.permute.xlu0 %624
        %vm626 = vcmp.eq.s32.totalorder %v625, 1
        %v627 = vsel %vm626, %v618, 0.0
        %629 = vrot.lane.b32.xlu0 %v627, 64
        %v630 = vpop.permute.xlu0 %629
        %s632 = scalar_lea.vmem %s335, %s512 [#allocation8]
        %633 = vst.msk [vmem:[%s632] sm:$0xff] %vm385, %v630
        %v634 = vsel %vm626, %v618, %v510
        %s635 = scalar_select %p374, 2, 1
        %s636 = smul.u32 %s635, 8
        %s637 = scalar_lea.vmem %s294, %s636 [#allocation3]
        %v638 = vld [vmem:[%s637] sm:$0xff]
        %640 = vrot.lane.b32.xlu0 %v634, 64
        %v641 = vpop.permute.xlu0 %640
        %v642 = vsel %vm385, %v641, 0
        %644 = vmatprep.subr.mxu0 0.0
        %645 = vmatpush1.msra.mxu0 %v362
        %646 = vmatprep.subr.mxu0 0.0
        %647 = vmatpush1.msra.mxu0 %v363
        %648 = vmatprep.subr.mxu0 0.0
        %649 = vmatpush1.msra.mxu0 %v364
        %650 = vmatprep.subr.mxu0 0.0
        %651 = vmatpush1.msra.mxu0 %v365
        %652 = vmatprep.subr.mxu0 0.0
        %653 = vmatpush1.msra.mxu0 0.0
        %654 = vmatprep.subr.mxu0 0.0
        %655 = vmatpush1.msra.mxu0 0.0
        %656 = vmatprep.subr.mxu0 0.0
        %657 = vmatpush1.msra.mxu0 0.0
        %658 = vmatprep.subr.mxu0 0.0
        %659 = vmatpush1.msra.mxu0 0.0
        %660 = vmatprep.subr.mxu0 0.0
        %661 = vmatpush1.msra.mxu0 0.0
        %662 = vmatprep.subr.mxu0 0.0
        %663 = vmatpush1.msra.mxu0 0.0
        %664 = vmatprep.subr.mxu0 0.0
        %665 = vmatpush1.msra.mxu0 0.0
        %666 = vmatprep.subr.mxu0 0.0
        %667 = vmatpush1.msra.mxu0 0.0
        %668 = vmatprep.subr.mxu0 0.0
        %669 = vmatpush1.msra.mxu0 0.0
        %670 = vmatprep.subr.mxu0 0.0
        %671 = vmatpush1.msra.mxu0 0.0
        %672 = vmatprep.subr.mxu0 0.0
        %673 = vmatpush1.msra.mxu0 0.0
        %674 = vmatprep.subr.mxu0 0.0
        %675 = vmatpush1.msra.mxu0 0.0
        %676 = vmatprep.subr.mxu0 0.0
        %677 = vmatpush1.msra.mxu0 0.0
        %678 = vmatprep.subr.mxu0 0.0
        %679 = vmatpush1.msra.mxu0 0.0
        %680 = vmatprep.subr.mxu0 0.0
        %681 = vmatpush1.msra.mxu0 0.0
        %682 = vmatprep.subr.mxu0 0.0
        %683 = vmatpush1.msra.mxu0 0.0
        %684 = vmatprep.subr.mxu0 0.0
        %685 = vmatpush1.msra.mxu0 0.0
        %686 = vmatprep.subr.mxu0 0.0
        %687 = vmatpush1.msra.mxu0 0.0
        %688 = vmatprep.subr.mxu0 0.0
        %689 = vmatpush1.msra.mxu0 0.0
        %690 = vmatprep.subr.mxu0 0.0
        %691 = vmatpush1.msra.mxu0 0.0
        %692 = vmatprep.subr.mxu0 0.0
        %693 = vmatpush1.msra.mxu0 0.0
        %694 = vmatprep.subr.mxu0 0.0
        %695 = vmatpush1.msra.mxu0 0.0
        %696 = vmatprep.subr.mxu0 0.0
        %697 = vmatpush1.msra.mxu0 0.0
        %698 = vmatprep.subr.mxu0 0.0
        %699 = vmatpush1.msra.mxu0 0.0
        %700 = vmatprep.subr.mxu0 0.0
        %701 = vmatpush1.msra.mxu0 0.0
        %702 = vmatprep.subr.mxu0 0.0
        %703 = vmatpush1.msra.mxu0 0.0
        %704 = vmatprep.subr.mxu0 0.0
        %705 = vmatpush1.msra.mxu0 0.0
        %706 = vmatprep.subr.mxu0 0.0
        %707 = vmatpush1.msra.mxu0 0.0
        %708 = vmatprep.mubr.f32.mxu0 0.0
        %709 = vmatmul.mubr.f32.gmra.mrb[0].mxu0 %v642
        %v710 = vpop.f32.mrb[0].mxu0
        %v711 = vadd.f32 %v383, %v710
        %v712 = vpop.f32.mrb[0].mxu0
        %713 = vdwg.mxu0
        %v714 = vadd.f32 %v638, %v711
        %v715 = vxor.u32 %v714, 2147483648
        %v716 = vmul.f32 %v715, 1.442695
        %v717 = vpow.pop %v716
        %v718 = vadd.f32 %v717, 1.0
        %v719 = vrcp.pop %v718
        %v720 = vmul.f32 1.0, %v719
        %722 = vrot.lane.b32.xlu0 %v711, 64
        %v723 = vpop.permute.xlu0 %722
        %v725 = vmul.f32 %v720, %v723
        %727 = vrot.lane.b32.xlu0 %v725, 64
        %v728 = vpop.permute.xlu0 %727
        %v730 = vadd.f32 %v638, %v728
        %v731 = vtanh.pop %v730
        %v732 = vsub.f32 %v634, %v731
        %734 = vrot.lane.b32.xlu0 %v732, 96
        %v735 = vpop.permute.xlu0 %734
        %v737 = vmul.f32 %v720, %v735
        %739 = vrot.lane.b32.xlu0 %v737, 32
        %v740 = vpop.permute.xlu0 %739
        %v742 = vadd.f32 %v731, %v740
        %s743 = sadd.s32 %s372, %s635
        %v744 = vstv %s743
        %vm745 = vcmp.lt.s32.totalorder %v744, %v367
        %v746 = vsel %vm745, 1, 0
        %747 = vset.pattern.permute.xlu0 0
        %748 = vperm.xlu0 %747, %v746
        %v749 = vpop.permute.xlu0 %748
        %vm750 = vcmp.eq.s32.totalorder %v749, 1
        %v751 = vsel %vm750, %v742, 0.0
        %753 = vrot.lane.b32.xlu0 %v751, 64
        %v754 = vpop.permute.xlu0 %753
        %s756 = scalar_lea.vmem %s335, %s636 [#allocation8]
        %757 = vst.msk [vmem:[%s756] sm:$0xff] %vm385, %v754
        %v758 = vsel %vm750, %v742, %v634
        %s759 = scalar_select %p374, 3, 0
        %s760 = smul.u32 %s759, 8
        %s761 = scalar_lea.vmem %s294, %s760 [#allocation3]
        %v762 = vld [vmem:[%s761] sm:$0xff]
        %764 = vrot.lane.b32.xlu0 %v758, 64
        %v765 = vpop.permute.xlu0 %764
        %v766 = vsel %vm385, %v765, 0
        %768 = vmatprep.subr.mxu0 0.0
        %769 = vmatpush1.msra.mxu0 %v362
        %770 = vmatprep.subr.mxu0 0.0
        %771 = vmatpush1.msra.mxu0 %v363
        %772 = vmatprep.subr.mxu0 0.0
        %773 = vmatpush1.msra.mxu0 %v364
        %774 = vmatprep.subr.mxu0 0.0
        %775 = vmatpush1.msra.mxu0 %v365
        %776 = vmatprep.subr.mxu0 0.0
        %777 = vmatpush1.msra.mxu0 0.0
        %778 = vmatprep.subr.mxu0 0.0
        %779 = vmatpush1.msra.mxu0 0.0
        %780 = vmatprep.subr.mxu0 0.0
        %781 = vmatpush1.msra.mxu0 0.0
        %782 = vmatprep.subr.mxu0 0.0
        %783 = vmatpush1.msra.mxu0 0.0
        %784 = vmatprep.subr.mxu0 0.0
        %785 = vmatpush1.msra.mxu0 0.0
        %786 = vmatprep.subr.mxu0 0.0
        %787 = vmatpush1.msra.mxu0 0.0
        %788 = vmatprep.subr.mxu0 0.0
        %789 = vmatpush1.msra.mxu0 0.0
        %790 = vmatprep.subr.mxu0 0.0
        %791 = vmatpush1.msra.mxu0 0.0
        %792 = vmatprep.subr.mxu0 0.0
        %793 = vmatpush1.msra.mxu0 0.0
        %794 = vmatprep.subr.mxu0 0.0
        %795 = vmatpush1.msra.mxu0 0.0
        %796 = vmatprep.subr.mxu0 0.0
        %797 = vmatpush1.msra.mxu0 0.0
        %798 = vmatprep.subr.mxu0 0.0
        %799 = vmatpush1.msra.mxu0 0.0
        %800 = vmatprep.subr.mxu0 0.0
        %801 = vmatpush1.msra.mxu0 0.0
        %802 = vmatprep.subr.mxu0 0.0
        %803 = vmatpush1.msra.mxu0 0.0
        %804 = vmatprep.subr.mxu0 0.0
        %805 = vmatpush1.msra.mxu0 0.0
        %806 = vmatprep.subr.mxu0 0.0
        %807 = vmatpush1.msra.mxu0 0.0
        %808 = vmatprep.subr.mxu0 0.0
        %809 = vmatpush1.msra.mxu0 0.0
        %810 = vmatprep.subr.mxu0 0.0
        %811 = vmatpush1.msra.mxu0 0.0
        %812 = vmatprep.subr.mxu0 0.0
        %813 = vmatpush1.msra.mxu0 0.0
        %814 = vmatprep.subr.mxu0 0.0
        %815 = vmatpush1.msra.mxu0 0.0
        %816 = vmatprep.subr.mxu0 0.0
        %817 = vmatpush1.msra.mxu0 0.0
        %818 = vmatprep.subr.mxu0 0.0
        %819 = vmatpush1.msra.mxu0 0.0
        %820 = vmatprep.subr.mxu0 0.0
        %821 = vmatpush1.msra.mxu0 0.0
        %822 = vmatprep.subr.mxu0 0.0
        %823 = vmatpush1.msra.mxu0 0.0
        %824 = vmatprep.subr.mxu0 0.0
        %825 = vmatpush1.msra.mxu0 0.0
        %826 = vmatprep.subr.mxu0 0.0
        %827 = vmatpush1.msra.mxu0 0.0
        %828 = vmatprep.subr.mxu0 0.0
        %829 = vmatpush1.msra.mxu0 0.0
        %830 = vmatprep.subr.mxu0 0.0
        %831 = vmatpush1.msra.mxu0 0.0
        %832 = vmatprep.mubr.f32.mxu0 0.0
        %833 = vmatmul.mubr.f32.gmra.mrb[0].mxu0 %v766
        %v834 = vpop.f32.mrb[0].mxu0
        %v835 = vadd.f32 %v383, %v834
        %v836 = vpop.f32.mrb[0].mxu0
        %837 = vdwg.mxu0
        %v838 = vadd.f32 %v762, %v835
        %v839 = vxor.u32 %v838, 2147483648
        %v840 = vmul.f32 %v839, 1.442695
        %v841 = vpow.pop %v840
        %v842 = vadd.f32 %v841, 1.0
        %v843 = vrcp.pop %v842
        %v844 = vmul.f32 1.0, %v843
        %846 = vrot.lane.b32.xlu0 %v835, 64
        %v847 = vpop.permute.xlu0 %846
        %v849 = vmul.f32 %v844, %v847
        %851 = vrot.lane.b32.xlu0 %v849, 64
        %v852 = vpop.permute.xlu0 %851
        %v854 = vadd.f32 %v762, %v852
        %v855 = vtanh.pop %v854
        %v856 = vsub.f32 %v758, %v855
        %858 = vrot.lane.b32.xlu0 %v856, 96
        %v859 = vpop.permute.xlu0 %858
        %v861 = vmul.f32 %v844, %v859
        %863 = vrot.lane.b32.xlu0 %v861, 32
        %v864 = vpop.permute.xlu0 %863
        %v866 = vadd.f32 %v855, %v864
        %s867 = sadd.s32 %s372, %s759
        %v868 = vstv %s867
        %vm869 = vcmp.lt.s32.totalorder %v868, %v367
        %v870 = vsel %vm869, 1, 0
        %871 = vset.pattern.permute.xlu0 0
        %872 = vperm.xlu0 %871, %v870
        %v873 = vpop.permute.xlu0 %872
        %vm874 = vcmp.eq.s32.totalorder %v873, 1
        %v875 = vsel %vm874, %v866, 0.0
        %877 = vrot.lane.b32.xlu0 %v875, 64
        %v878 = vpop.permute.xlu0 %877
        %s880 = scalar_lea.vmem %s335, %s760 [#allocation8]
        %881 = vst.msk [vmem:[%s880] sm:$0xff] %vm385, %v878
        %v882 = vsel %vm874, %v866, %v758
        %884 = vrot.lane.b32.xlu0 %v882, 64
        %v885 = vpop.permute.xlu0 %884
        %887 = vst.msk [vmem:[#allocation2] sm:$0xff] %vm385, %v885
        %p888 = scmp.eq.s32.totalorder %s34, 2
        // Predicated region
        $region49: #{tpu_custom_call.1} parent=35 // pred_check
          %p889 = pneg %p888
        $region50: #{tpu_custom_call.1} parent=35 // pred_check_branch
          %891 = sbr.rel (%p889) target = $region52
        $region51: #{tpu_custom_call.1} parent=35 // pred_region
          %892 = vst.msk [vmem:[%s342] sm:$0xff] %vm385, %v885
        $region52: #{tpu_custom_call.1} parent=35 // pred_fallthru
          _
        %s893 = sand.u32 %s168, 1
        %s894 = scalar_lea.sflag [#allocation5], %s893
        %s895 = sand.u32 %s168, 1
        %s896 = smul.addr %s895, 32
        %s897 = scalar_lea.vmem [#allocation8], %s896
        %s898 = sand.u32 %s194, 1
        %s899 = scalar_lea.sflag [#allocation10], %s898
        %s900 = sand.u32 %s194, 1
        %s901 = smul.addr %s900, 8
        %s902 = scalar_lea.vmem [#allocation9], %s901
        // Predicated region
        $region53: #{tpu_custom_call.1} parent=35 // pred_check
          %p903 = pneg %p178
        $region54: #{tpu_custom_call.1} parent=35 // pred_check_branch
          %905 = sbr.rel (%p903) target = $region56
        $region55: #{tpu_custom_call.1} parent=35 // pred_region
          %s906 = smul.u32 %s34, 2
          %s907 = ssub.s32 2, %s906
          %s908 = smul.u32 %s33, %s907
          %s909 = sadd.s32 %s34, %s908
          %s910 = smul.u32 4, %s909
          %s912 = ssub.s32 512, 512
          %913 = vsyncadd %s894, %s912
          %s914 = smul.addr %s33, 12
          %s915 = sadd.s32 %s910, %s914
          %s916 = smul.addr %s915, 128
          %s917 = scalar_lea.hbm %s4, %s916
          %s918 = sshll.u32 %s897, 4
          %s919 = int_to_ptr.vmem [resolvable:$true] %s918
          %924 = dma.vmem_to_hbm [thread:$0]  %s919, 512, %s917, %s894, 128, 128, 8
        $region56: #{tpu_custom_call.1} parent=35 // pred_fallthru
          _
        // Predicated region
        $region57: #{tpu_custom_call.1} parent=35 // pred_check
          %p925 = pneg %p204
        $region58: #{tpu_custom_call.1} parent=35 // pred_check_branch
          %927 = sbr.rel (%p925) target = $region60
        $region59: #{tpu_custom_call.1} parent=35 // pred_region
          %s929 = ssub.s32 128, 128
          %930 = vsyncadd %s899, %s929
          %s931 = smul.addr %s33, 128
          %s932 = scalar_lea.hbm %s5, %s931
          %s934 = sshll.u32 %s902, 4
          %s935 = int_to_ptr.vmem [resolvable:$true] %s934
          %937 = dma.vmem_to_hbm [thread:$0]  %s935, 128, %s932, %s899
        $region60: #{tpu_custom_call.1} parent=35 // pred_fallthru
          _
      $region36: #{tpu_custom_call.1} parent=5 // pred_fallthru
        _
      %p938 = scmp.le.s32.totalorder 2, %s24
      // Predicated region
      $region61: #{tpu_custom_call.1} parent=5 // pred_check
        %p939 = pneg %p938
      $region62: #{tpu_custom_call.1} parent=5 // pred_check_branch
        %941 = sbr.rel (%p939) target = $region64
      $region63: #{tpu_custom_call.1} parent=5 // pred_region
        %s942 = ssub.s32 %s24, 2
        // Predicated region
        $region65: #{tpu_custom_call.1} parent=63 // pred_check
          %p943 = pneg %p184
        $region66: #{tpu_custom_call.1} parent=63 // pred_check_branch
          %945 = sbr.rel (%p943) target = $region68
        $region67: #{tpu_custom_call.1} parent=63 // pred_region
          %s946 = sand.u32 %s169, 1
          %s947 = scalar_lea.sflag [#allocation5], %s946
          %s948 = sand.u32 %s169, 1
          %s949 = smul.addr %s948, 32
          %s950 = scalar_lea.vmem [#allocation8], %s949
          %951 = dma.done %s947, 512
        $region68: #{tpu_custom_call.1} parent=63 // pred_fallthru
          _
        // Predicated region
        $region69: #{tpu_custom_call.1} parent=63 // pred_check
          %p952 = pneg %p210
        $region70: #{tpu_custom_call.1} parent=63 // pred_check_branch
          %954 = sbr.rel (%p952) target = $region72
        $region71: #{tpu_custom_call.1} parent=63 // pred_region
          %s955 = sand.u32 %s195, 1
          %s956 = scalar_lea.sflag [#allocation10], %s955
          %s957 = sand.u32 %s195, 1
          %s958 = smul.addr %s957, 8
          %s959 = scalar_lea.vmem [#allocation9], %s958
          %960 = dma.done %s956, 128
        $region72: #{tpu_custom_call.1} parent=63 // pred_fallthru
          _
      $region64: #{tpu_custom_call.1} parent=5 // pred_fallthru
        _
    $region6: #{tpu_custom_call.1} parent=1 // loop_footer
      %s28 = sadd.s32 1, %s24
    $region7: #{tpu_custom_call.1} parent=1 // loop_footer_branch
      %23 = sbr.rel target = $region3
    $region8: #{tpu_custom_call.1} parent=1 // loop_exit
      _
    %961 = vsyncpa [#allocation4], 1
    %s962 = scalar_lea.sflag [#allocation4], 1
    %963 = vsyncpa %s962, 1
    %964 = vsyncpa [#allocation7], 1
    %s965 = scalar_lea.sflag [#allocation7], 1
    %966 = vsyncpa %s965, 1
    %967 = vsyncpa [#allocation5], 1
    %s968 = scalar_lea.sflag [#allocation5], 1
    %969 = vsyncpa %s968, 1
    %970 = vsyncpa [#allocation10], 1
    %s971 = scalar_lea.sflag [#allocation10], 1
    %972 = vsyncpa %s971, 1

</llo_original>
